<compile_context>
chip_gen: v7x
topology: tpu7x:2x2x1
jax: 0.10.0
libtpu: 0.0.40
codegen_flags: <defaults>
</compile_context>

<pallas_src>
import functools

import jax
import jax.numpy as jnp
from jax import lax
from jax.experimental import pallas as pl
from jax.experimental.pallas import tpu as pltpu


def _round_up(n: int, m: int) -> int:
    return (n + m - 1) // m * m


def _cumprob_kernel(x_ref, w_ref, b_ref, out_ref, *, t_real: int):
    # x_ref: (B_TILE, F) bf16 | w_ref: (F, Np) bf16 | b_ref: (1, Np) f32 | out_ref: (B_TILE, Np) f32
    x = x_ref[...]
    w = w_ref[...]

    # Fused hazard + base projection, f32 accumulate on the MXU, bias add in f32.
    z = jnp.dot(x, w, preferred_element_type=jnp.float32) + b_ref[...]      # (B_TILE, Np)

    hazards = jnp.maximum(z, 0.0)                                           # (B_TILE, Np)
    base = z[:, t_real:t_real + 1]                                          # (B_TILE, 1) base column

    # Upper-triangular inclusive mask generated in-kernel: mask[i, j] = (i <= j).
    # Columns > t_real of `hazards` come from zero-padded weights/bias -> relu(0) = 0, and
    # the base column (i == t_real) only feeds output columns j >= t_real, which are sliced off.
    n_p = z.shape[-1]
    row = lax.broadcasted_iota(jnp.int32, (n_p, n_p), 0)
    col = lax.broadcasted_iota(jnp.int32, (n_p, n_p), 1)
    mask = (row <= col).astype(jnp.float32)                                 # (Np, Np)

    cum = jnp.dot(hazards, mask, preferred_element_type=jnp.float32) + base
    out_ref[...] = cum.astype(out_ref.dtype)


def cumulative_probability_layer(x, w_hazard, b_hazard, w_base, b_base, *,
                                 b_tile: int = 128,
                                 compute_dtype=jnp.bfloat16):
    """x: (B, F); w_hazard: (T, F); b_hazard: (T,); w_base: (1, F); b_base: (1,). Returns (B, T) f32."""
    B, F = x.shape
    T = w_hazard.shape[0]

    # Lane-dense fused output width: hazard columns [0, T), base column at T, zero-pad to 128k.
    Np = _round_up(T + 1, 128)

    w_cat = jnp.zeros((F, Np), jnp.float32)
    w_cat = w_cat.at[:, :T].set(w_hazard.T)
    w_cat = w_cat.at[:, T].set(w_base[0])
    b_cat = jnp.zeros((1, Np), jnp.float32)
    b_cat = b_cat.at[0, :T].set(b_hazard)
    b_cat = b_cat.at[0, T].set(b_base[0])

    # bf16 for the streamed/matmul operands; accumulation & elementwise math stay f32.
    x_c = x.astype(compute_dtype)
    w_c = w_cat.astype(compute_dtype)

    # Batch tiling (sublane-aligned), pad B up to a multiple of the tile.
    B_TILE = min(b_tile, _round_up(B, 8))
    Bp = _round_up(B, B_TILE)
    if Bp != B:
        x_c = jnp.pad(x_c, ((0, Bp - B), (0, 0)))

    grid = (Bp // B_TILE,)

    out = pl.pallas_call(
        functools.partial(_cumprob_kernel, t_real=T),
        out_shape=jax.ShapeDtypeStruct((Bp, Np), jnp.float32),
        grid=grid,
        in_specs=[
            pl.BlockSpec((B_TILE, F), lambda i: (i, 0)),   # x: streamed over batch
            pl.BlockSpec((F, Np), lambda i: (0, 0)),       # fused weights: VMEM-resident
            pl.BlockSpec((1, Np), lambda i: (0, 0)),       # fused bias: VMEM-resident
        ],
        out_specs=pl.BlockSpec((B_TILE, Np), lambda i: (i, 0)),
        compiler_params=pltpu.CompilerParams(
            dimension_semantics=("parallel",),             # megacore-shardable batch axis
        ),
    )(x_c, w_c, b_cat)

    return out[:B, :T]


def _reference(x, w_hazard, b_hazard, w_base, b_base):
    """Pure-JAX reference, identical math to the PyTorch module."""
    T = w_hazard.shape[0]
    hazards = jax.nn.relu(x @ w_hazard.T + b_hazard)              # (B, T)
    base = x @ w_base.T + b_base                                  # (B, 1)
    mask = jnp.tril(jnp.ones((T, T), jnp.float32)).T              # (T, T)
    expanded = hazards[:, :, None] * mask[None, :, :]             # (B, T, T)
    return expanded.sum(axis=1) + base                            # (B, T)


if __name__ == "__main__":
    B, F, T = 2, 32, 8  # batch, num_features, max_followup

    key = jax.random.PRNGKey(0)
    k_x, k_wh, k_bh, k_wb, k_bb = jax.random.split(key, 5)

    bound = 1.0 / jnp.sqrt(jnp.float32(F))
    x = jax.random.normal(k_x, (B, F), dtype=jnp.float32)
    w_hazard = jax.random.uniform(k_wh, (T, F), jnp.float32, -bound, bound)
    b_hazard = jax.random.uniform(k_bh, (T,), jnp.float32, -bound, bound)
    w_base = jax.random.uniform(k_wb, (1, F), jnp.float32, -bound, bound)
    b_base = jax.random.uniform(k_bb, (1,), jnp.float32, -bound, bound)

    out = cumulative_probability_layer(x, w_hazard, b_hazard, w_base, b_base)
    out = jax.block_until_ready(out)
    assert out.shape == (B, T)

    # Reference with the same bf16 input cast (kernel keeps f32 accumulation) -> tight match.
    xb = x.astype(jnp.bfloat16).astype(jnp.float32)
    whb = w_hazard.astype(jnp.bfloat16).astype(jnp.float32)
    wbb = w_base.astype(jnp.bfloat16).astype(jnp.float32)
    ref_bf16 = _reference(xb, whb, b_hazard, wbb, b_base)
    assert jnp.allclose(out, ref_bf16, atol=1e-4, rtol=1e-4)

    # Sanity check against the full-f32 reference (loose tolerance covers bf16 input rounding).
    ref_f32 = _reference(x, w_hazard, b_hazard, w_base, b_base)
    assert jnp.allclose(out, ref_f32, atol=1e-1, rtol=1e-1)

    print("KERNEL_OK")
</pallas_src>

<mosaic_0001>
module attributes {stable_mosaic.version = 11 : i64} {
  func.func @_cumprob_kernel(%arg0: i32, %arg1: memref<8x32xbf16, #tpu.memory_space<vmem>>, %arg2: memref<32x128xbf16, #tpu.memory_space<vmem>>, %arg3: memref<1x128xf32, #tpu.memory_space<vmem>>, %arg4: memref<8x128xf32, #tpu.memory_space<vmem>>) attributes {dimension_semantics = [#tpu.dimension_semantics<parallel>], iteration_bounds = array<i64: 1>, scalar_prefetch = 0 : i64, scratch_operands = 0 : i64, tpu.core_type = #tpu.core_type<tc>, window_params = [{transform_indices = @transform_0, window_bounds = array<i64: 8, 32>}, {pipeline_mode = #tpu.pipeline_mode<synchronous>, transform_indices = @transform_1, window_bounds = array<i64: 32, 128>}, {pipeline_mode = #tpu.pipeline_mode<synchronous>, transform_indices = @transform_2, window_bounds = array<i64: 1, 128>}, {transform_indices = @transform_3, window_bounds = array<i64: 8, 128>}]} {
    %c0 = arith.constant 0 : index
    %c0_0 = arith.constant 0 : index
    %0 = vector.load %arg1[%c0, %c0_0] : memref<8x32xbf16, #tpu.memory_space<vmem>>, vector<8x32xbf16>
    %c0_1 = arith.constant 0 : index
    %c0_2 = arith.constant 0 : index
    %1 = vector.load %arg2[%c0_1, %c0_2] : memref<32x128xbf16, #tpu.memory_space<vmem>>, vector<32x128xbf16>
    %cst = arith.constant dense<0.000000e+00> : vector<8x128xf32>
    %2 = tpu.matmul %0, %1, %cst {dimension_numbers = #tpu.dot_dimension_numbers<[1], [0], [0], [1], [0, 0, 1, 1], [], []>} : vector<8x32xbf16>, vector<32x128xbf16>, vector<8x128xf32> -> vector<8x128xf32>
    %c0_3 = arith.constant 0 : index
    %c0_4 = arith.constant 0 : index
    %3 = vector.load %arg3[%c0_3, %c0_4] : memref<1x128xf32, #tpu.memory_space<vmem>>, vector<1x128xf32>
    %4 = vector.broadcast %3 : vector<1x128xf32> to vector<8x128xf32>
    %5 = arith.addf %2, %4 : vector<8x128xf32>
    %cst_5 = arith.constant 0.000000e+00 : f32
    %6 = vector.broadcast %cst_5 : f32 to vector<8x128xf32>
    %7 = arith.maximumf %5, %6 : vector<8x128xf32>
    %8 = vector.extract_strided_slice %5 {offsets = [0, 8], sizes = [8, 1], strides = [1, 1]} : vector<8x128xf32> to vector<8x1xf32>
    %9 = tpu.iota {dimensions = array<i32: 0>} : vector<128x128xi32>
    %10 = tpu.iota {dimensions = array<i32: 1>} : vector<128x128xi32>
    %11 = arith.cmpi sle, %9, %10 : vector<128x128xi32>
    %12 = arith.extui %11 : vector<128x128xi1> to vector<128x128xi32>
    %13 = arith.sitofp %12 : vector<128x128xi32> to vector<128x128xf32>
    %cst_6 = arith.constant dense<0.000000e+00> : vector<8x128xf32>
    %14 = tpu.matmul %7, %13, %cst_6 {dimension_numbers = #tpu.dot_dimension_numbers<[1], [0], [0], [1], [0, 0, 1, 1], [], []>} : vector<8x128xf32>, vector<128x128xf32>, vector<8x128xf32> -> vector<8x128xf32>
    %15 = vector.broadcast %8 : vector<8x1xf32> to vector<8x128xf32>
    %16 = arith.addf %14, %15 : vector<8x128xf32>
    %c0_7 = arith.constant 0 : index
    %c0_8 = arith.constant 0 : index
    %17 = vector.load %arg4[%c0_7, %c0_8] : memref<8x128xf32, #tpu.memory_space<vmem>>, vector<8x128xf32>
    tpu.vector_store %arg4[%c0_7, %c0_8], %16 {strides = array<i32>} : memref<8x128xf32, #tpu.memory_space<vmem>>, vector<8x128xf32>,
    return
  }
  func.func @transform_0(%arg0: i32) -> (i32, i32) {
    %c0_i32 = arith.constant 0 : i32
    %c0_i32_0 = arith.constant 0 : i32
    return %arg0, %c0_i32 : i32, i32
  }
  func.func @transform_1(%arg0: i32) -> (i32, i32) {
    %c0_i32 = arith.constant 0 : i32
    %c0_i32_0 = arith.constant 0 : i32
    %c0_i32_1 = arith.constant 0 : i32
    return %c0_i32, %c0_i32_0 : i32, i32
  }
  func.func @transform_2(%arg0: i32) -> (i32, i32) {
    %c0_i32 = arith.constant 0 : i32
    %c0_i32_0 = arith.constant 0 : i32
    %c0_i32_1 = arith.constant 0 : i32
    return %c0_i32, %c0_i32_0 : i32, i32
  }
  func.func @transform_3(%arg0: i32) -> (i32, i32) {
    %c0_i32 = arith.constant 0 : i32
    %c0_i32_0 = arith.constant 0 : i32
    return %arg0, %c0_i32 : i32, i32
  }
}

</mosaic_0001>

<llo_original>
// kernel: tpu_custom_call.1
$region0: #{tpu_custom_call.1}
  #allocation0 [shape = 'u32[]', space=smem, size = 0x4, offset = 0x4, fixed_abs, tag = 'smem constant byte address 0x4 - core index']
  #allocation1 [shape = 'u32[144,128]{1,0:T(1,128)}', space=vmem, size = 0x12000, scoped, tag = 'internal scratch']
  %s0 = inlined_call_operand.hbm [shape: bf16[8,32], index: 0, kind: input, shape index: {}]
  %s1 = inlined_call_operand.hbm [shape: bf16[32,128], index: 1, kind: input, shape index: {}]
  %s2 = inlined_call_operand.vmem [shape: f32[1,128], index: 2, kind: input, shape index: {}]
  %s3 = inlined_call_operand.hbm [shape: f32[8,128], index: 3, kind: output, shape index: {}]
  %s4 = sld [smem:[#allocation0]]
  $region30: #{tpu_custom_call.1} parent=0
    _
  %s6 = ssub.s32 1, %s4
  %s7 = scalar_select 0, %s6, %s4
  $region1: #{tpu_custom_call.1} parent=0
    #allocation2 [shape = 'u8[2048]{0}', space=vmem, size = 0x800, scoped, tag = 'input window, operand 0, single buffered']
    #allocation3 [shape = 's32[1]{0}', space=sflag, size = 0x4, scoped, tag = 'scoped memory for tpu_custom_call.1']
    #allocation4 [shape = 's32[1]{0}', space=sflag, size = 0x4, scoped, tag = 'scoped memory for tpu_custom_call.1']
    #allocation5 [shape = 'u8[8192]{0}', space=vmem, size = 0x2000, scoped, tag = 'input window, operand 1, single buffered']
    #allocation6 [shape = 's32[1]{0}', space=sflag, size = 0x4, scoped, tag = 'scoped memory for tpu_custom_call.1']
    #allocation7 [shape = 'u8[4096]{0}', space=vmem, size = 0x1000, scoped, tag = 'output window, operand 0, single buffered']
    %8 = vsyncpa [#allocation3], 0
    %9 = vsyncpa [#allocation6], 0
    %10 = vsyncpa [#allocation4], 0
    // Predicated region
    $region2: #{tpu_custom_call.1} parent=1 // pred_check
      _
    $region3: #{tpu_custom_call.1} parent=1 // pred_check_branch
      %12 = sbr.rel (0) target = $region5
    $region4: #{tpu_custom_call.1} parent=1 // pred_region
      %s14 = ssub.s32 64, 64
      %15 = vsyncadd [#allocation3], %s14
      %s17 = sshll.u32 [#allocation2], 4
      %s18 = int_to_ptr.vmem [resolvable:$true] %s17
      %20 = dma.hbm_to_vmem [thread:$0]  %s0, 64, %s18, [#allocation3]
    $region5: #{tpu_custom_call.1} parent=1 // pred_fallthru
      _
    // Predicated region
    $region6: #{tpu_custom_call.1} parent=1 // pred_check
      _
    $region7: #{tpu_custom_call.1} parent=1 // pred_check_branch
      %22 = sbr.rel (0) target = $region9
    $region8: #{tpu_custom_call.1} parent=1 // pred_region
      %s24 = ssub.s32 256, 256
      %25 = vsyncadd [#allocation6], %s24
      %s26 = sshll.u32 [#allocation5], 4
      %s27 = int_to_ptr.vmem [resolvable:$true] %s26
      %32 = dma.hbm_to_vmem [thread:$0]  %s1, 256, %s27, [#allocation6], 64, 64, 4
    $region9: #{tpu_custom_call.1} parent=1 // pred_fallthru
      _
    // Predicated region
    $region10: #{tpu_custom_call.1} parent=1 // pred_check
      _
    $region11: #{tpu_custom_call.1} parent=1 // pred_check_branch
      %34 = sbr.rel (0) target = $region13
    $region12: #{tpu_custom_call.1} parent=1 // pred_region
      _
    $region13: #{tpu_custom_call.1} parent=1 // pred_fallthru
      _
    // Predicated region
    $region14: #{tpu_custom_call.1} parent=1 // pred_check
      _
    $region15: #{tpu_custom_call.1} parent=1 // pred_check_branch
      %36 = sbr.rel (0) target = $region17
    $region16: #{tpu_custom_call.1} parent=1 // pred_region
      %37 = dma.done [#allocation3], 64
    $region17: #{tpu_custom_call.1} parent=1 // pred_fallthru
      _
    // Predicated region
    $region18: #{tpu_custom_call.1} parent=1 // pred_check
      _
    $region19: #{tpu_custom_call.1} parent=1 // pred_check_branch
      %39 = sbr.rel (0) target = $region21
    $region20: #{tpu_custom_call.1} parent=1 // pred_region
      %40 = dma.done [#allocation6], 256
    $region21: #{tpu_custom_call.1} parent=1 // pred_fallthru
      _
    %v42 = vld [vmem:[#allocation2] sm:$0xf]
    %v43 = vld [vmem:[#allocation5] sm:$0xf]
    %v44 = vld [vmem:[#allocation5 + $0x4] sm:$0xf]
    %v45 = vld [vmem:[#allocation5 + $0x8] sm:$0xf]
    %v46 = vld [vmem:[#allocation5 + $0xc] sm:$0xf]
    %v47 = vld [vmem:[%s2] sm:$0x1]
    %v49 = vlaneseq
    %v50 = vshrl.u32 %v49, 7
    %v51 = vsub.s32 0, %v50
    %v52 = vrot.slane %v47, %v51
    %v58 = vunpack.c.l.b16 %v43
    %v59 = vunpack.c.l.b16 %v44
    %v60 = vunpack.c.l.b16 %v45
    %v61 = vunpack.c.l.b16 %v46
    %v62 = vpack.c.b16 %v59, %v58
    %v63 = vpack.c.b16 %v61, %v60
    %vm66 = vcmask 261120
    %v68 = vsel %vm66, %v42, 0
    %70 = vmatprep.subr.bf16.mxu0 0
    %71 = vmatpush1.bf16.msra.mxu0 %v62
    %72 = vmatprep.subr.bf16.mxu0 0
    %73 = vmatpush1.bf16.msra.mxu0 %v63
    %74 = vmatprep.subr.bf16.mxu0 0
    %75 = vmatpush1.bf16.msra.mxu0 0
    %76 = vmatprep.subr.bf16.mxu0 0
    %77 = vmatpush1.bf16.msra.mxu0 0
    %78 = vmatprep.subr.bf16.mxu0 0
    %79 = vmatpush1.bf16.msra.mxu0 0
    %80 = vmatprep.subr.bf16.mxu0 0
    %81 = vmatpush1.bf16.msra.mxu0 0
    %82 = vmatprep.subr.bf16.mxu0 0
    %83 = vmatpush1.bf16.msra.mxu0 0
    %84 = vmatprep.subr.bf16.mxu0 0
    %85 = vmatpush1.bf16.msra.mxu0 0
    %86 = vmatprep.subr.bf16.mxu0 0
    %87 = vmatpush1.bf16.msra.mxu0 0
    %88 = vmatprep.subr.bf16.mxu0 0
    %89 = vmatpush1.bf16.msra.mxu0 0
    %90 = vmatprep.subr.bf16.mxu0 0
    %91 = vmatpush1.bf16.msra.mxu0 0
    %92 = vmatprep.subr.bf16.mxu0 0
    %93 = vmatpush1.bf16.msra.mxu0 0
    %94 = vmatprep.subr.bf16.mxu0 0
    %95 = vmatpush1.bf16.msra.mxu0 0
    %96 = vmatprep.subr.bf16.mxu0 0
    %97 = vmatpush1.bf16.msra.mxu0 0
    %98 = vmatprep.subr.bf16.mxu0 0
    %99 = vmatpush1.bf16.msra.mxu0 0
    %100 = vmatprep.subr.bf16.mxu0 0
    %101 = vmatpush1.bf16.msra.mxu0 0
    %102 = vmatprep.mubr.bf16.mxu0 0
    %103 = vmatmul.mubr.bf16.gmra.mrb[0].mxu0 %v68
    %v104 = vpop.f32.mrb[0].mxu0
    %v105 = vadd.f32 %v52, %v104
    %v106 = vpop.f32.mrb[0].mxu0
    %v107 = vpop.f32.mrb[0].mxu0
    %v108 = vpop.f32.mrb[0].mxu0
    %109 = vdwg.mxu0
    %v110 = vmax.f32 %v105, 0.0
    %v111 = vlaneseq
    %v112 = vshrl.u32 %v111, 7
    %v113 = vadd.s32 %v112, 8
    %v114 = vadd.s32 %v112, 16
    %v115 = vadd.s32 %v112, 24
    %v116 = vadd.s32 %v112, 32
    %v117 = vadd.s32 %v112, 40
    %v118 = vadd.s32 %v112, 48
    %v119 = vadd.s32 %v112, 56
    %v120 = vadd.s32 %v112, 64
    %v121 = vadd.s32 %v112, 72
    %v122 = vadd.s32 %v112, 80
    %v123 = vadd.s32 %v112, 88
    %v124 = vadd.s32 %v112, 96
    %v125 = vadd.s32 %v112, 104
    %v126 = vadd.s32 %v112, 112
    %v127 = vadd.s32 %v112, 120
    %v128 = vlaneseq
    %v129 = vand.u32 %v128, 127
    %vm130 = vcmp.le.s32.totalorder %v112, %v129
    %vm131 = vcmp.le.s32.totalorder %v113, %v129
    %vm132 = vcmp.le.s32.totalorder %v114, %v129
    %vm133 = vcmp.le.s32.totalorder %v115, %v129
    %vm134 = vcmp.le.s32.totalorder %v116, %v129
    %vm135 = vcmp.le.s32.totalorder %v117, %v129
    %vm136 = vcmp.le.s32.totalorder %v118, %v129
    %vm137 = vcmp.le.s32.totalorder %v119, %v129
    %vm138 = vcmp.le.s32.totalorder %v120, %v129
    %vm139 = vcmp.le.s32.totalorder %v121, %v129
    %vm140 = vcmp.le.s32.totalorder %v122, %v129
    %vm141 = vcmp.le.s32.totalorder %v123, %v129
    %vm142 = vcmp.le.s32.totalorder %v124, %v129
    %vm143 = vcmp.le.s32.totalorder %v125, %v129
    %vm144 = vcmp.le.s32.totalorder %v126, %v129
    %vm145 = vcmp.le.s32.totalorder %v127, %v129
    %v146 = vsel %vm130, 1, 0
    %v147 = vsel %vm131, 1, 0
    %v148 = vsel %vm132, 1, 0
    %v149 = vsel %vm133, 1, 0
    %v150 = vsel %vm134, 1, 0
    %v151 = vsel %vm135, 1, 0
    %v152 = vsel %vm136, 1, 0
    %v153 = vsel %vm137, 1, 0
    %v154 = vsel %vm138, 1, 0
    %v155 = vsel %vm139, 1, 0
    %v156 = vsel %vm140, 1, 0
    %v157 = vsel %vm141, 1, 0
    %v158 = vsel %vm142, 1, 0
    %v159 = vsel %vm143, 1, 0
    %v160 = vsel %vm144, 1, 0
    %v161 = vsel %vm145, 1, 0
    %v162 = vcvt.s32.f32 %v146
    %v163 = vcvt.s32.f32 %v147
    %v164 = vcvt.s32.f32 %v148
    %v165 = vcvt.s32.f32 %v149
    %v166 = vcvt.s32.f32 %v150
    %v167 = vcvt.s32.f32 %v151
    %v168 = vcvt.s32.f32 %v152
    %v169 = vcvt.s32.f32 %v153
    %v170 = vcvt.s32.f32 %v154
    %v171 = vcvt.s32.f32 %v155
    %v172 = vcvt.s32.f32 %v156
    %v173 = vcvt.s32.f32 %v157
    %v174 = vcvt.s32.f32 %v158
    %v175 = vcvt.s32.f32 %v159
    %v176 = vcvt.s32.f32 %v160
    %v177 = vcvt.s32.f32 %v161
    %179 = vset.pattern.permute.xlu0 8
    %180 = vperm.xlu0 %179, %v105
    %v181 = vpop.permute.xlu0 %180
    %183 = vmatprep.subr.mxu0 0.0
    %184 = vmatpush1.msra.mxu0 %v162
    %185 = vmatprep.subr.mxu0 0.0
    %186 = vmatpush1.msra.mxu0 %v163
    %187 = vmatprep.subr.mxu0 0.0
    %188 = vmatpush1.msra.mxu0 %v164
    %189 = vmatprep.subr.mxu0 0.0
    %190 = vmatpush1.msra.mxu0 %v165
    %191 = vmatprep.subr.mxu0 0.0
    %192 = vmatpush1.msra.mxu0 %v166
    %193 = vmatprep.subr.mxu0 0.0
    %194 = vmatpush1.msra.mxu0 %v167
    %195 = vmatprep.subr.mxu0 0.0
    %196 = vmatpush1.msra.mxu0 %v168
    %197 = vmatprep.subr.mxu0 0.0
    %198 = vmatpush1.msra.mxu0 %v169
    %199 = vmatprep.subr.mxu0 0.0
    %200 = vmatpush1.msra.mxu0 %v170
    %201 = vmatprep.subr.mxu0 0.0
    %202 = vmatpush1.msra.mxu0 %v171
    %203 = vmatprep.subr.mxu0 0.0
    %204 = vmatpush1.msra.mxu0 %v172
    %205 = vmatprep.subr.mxu0 0.0
    %206 = vmatpush1.msra.mxu0 %v173
    %207 = vmatprep.subr.mxu0 0.0
    %208 = vmatpush1.msra.mxu0 %v174
    %209 = vmatprep.subr.mxu0 0.0
    %210 = vmatpush1.msra.mxu0 %v175
    %211 = vmatprep.subr.mxu0 0.0
    %212 = vmatpush1.msra.mxu0 %v176
    %213 = vmatprep.subr.mxu0 0.0
    %214 = vmatpush1.msra.mxu0 %v177
    %215 = vmatprep.subr.mxu0 0.0
    %216 = vmatpush1.msra.mxu0 0.0
    %217 = vmatprep.subr.mxu0 0.0
    %218 = vmatpush1.msra.mxu0 0.0
    %219 = vmatprep.subr.mxu0 0.0
    %220 = vmatpush1.msra.mxu0 0.0
    %221 = vmatprep.subr.mxu0 0.0
    %222 = vmatpush1.msra.mxu0 0.0
    %223 = vmatprep.subr.mxu0 0.0
    %224 = vmatpush1.msra.mxu0 0.0
    %225 = vmatprep.subr.mxu0 0.0
    %226 = vmatpush1.msra.mxu0 0.0
    %227 = vmatprep.subr.mxu0 0.0
    %228 = vmatpush1.msra.mxu0 0.0
    %229 = vmatprep.subr.mxu0 0.0
    %230 = vmatpush1.msra.mxu0 0.0
    %231 = vmatprep.subr.mxu0 0.0
    %232 = vmatpush1.msra.mxu0 0.0
    %233 = vmatprep.subr.mxu0 0.0
    %234 = vmatpush1.msra.mxu0 0.0
    %235 = vmatprep.subr.mxu0 0.0
    %236 = vmatpush1.msra.mxu0 0.0
    %237 = vmatprep.subr.mxu0 0.0
    %238 = vmatpush1.msra.mxu0 0.0
    %239 = vmatprep.subr.mxu0 0.0
    %240 = vmatpush1.msra.mxu0 0.0
    %241 = vmatprep.subr.mxu0 0.0
    %242 = vmatpush1.msra.mxu0 0.0
    %243 = vmatprep.subr.mxu0 0.0
    %244 = vmatpush1.msra.mxu0 0.0
    %245 = vmatprep.subr.mxu0 0.0
    %246 = vmatpush1.msra.mxu0 0.0
    %247 = vmatprep.mubr.f32.mxu0 0.0
    %248 = vmatmul.mubr.f32.gmra.mrb[0].mxu0 %v110
    %v249 = vpop.f32.mrb[0].mxu0
    %v250 = vadd.f32 %v181, %v249
    %v251 = vpop.f32.mrb[0].mxu0
    %252 = vdwg.mxu0
    %253 = vst [vmem:[#allocation7] sm:$0xff] %v250
    // Predicated region
    $region22: #{tpu_custom_call.1} parent=1 // pred_check
      _
    $region23: #{tpu_custom_call.1} parent=1 // pred_check_branch
      %255 = sbr.rel (0) target = $region25
    $region24: #{tpu_custom_call.1} parent=1 // pred_region
      %s257 = ssub.s32 128, 128
      %258 = vsyncadd [#allocation4], %s257
      %s260 = sshll.u32 [#allocation7], 4
      %s261 = int_to_ptr.vmem [resolvable:$true] %s260
      %263 = dma.vmem_to_hbm [thread:$0]  %s261, 128, %s3, [#allocation4]
    $region25: #{tpu_custom_call.1} parent=1 // pred_fallthru
      _
    // Predicated region
    $region26: #{tpu_custom_call.1} parent=1 // pred_check
      _
    $region27: #{tpu_custom_call.1} parent=1 // pred_check_branch
      %265 = sbr.rel (0) target = $region29
    $region28: #{tpu_custom_call.1} parent=1 // pred_region
      %266 = dma.done [#allocation4], 128
    $region29: #{tpu_custom_call.1} parent=1 // pred_fallthru
      _
    %267 = vsyncpa [#allocation3], 1
    %268 = vsyncpa [#allocation6], 1
    %269 = vsyncpa [#allocation4], 1

</llo_original>
